<compile_context>
chip_gen: v7x
topology: tpu7x:2x2x1
jax: 0.10.0
libtpu: 0.0.40
codegen_flags: <defaults>
</compile_context>

<pallas_src>
import jax
import jax.numpy as jnp
from jax.experimental import pallas as pl
from jax.experimental.pallas import tpu as pltpu


def attention_kernel(enc_ref, hb_ref, w_e_ref, v_ref, out_ref):
    S, TB, E2 = enc_ref.shape
    D = w_e_ref.shape[1]

    # Encoder-side projection on the MXU (bf16 inputs, f32 accumulation).
    enc = enc_ref[...]                                            # [S, TB, E2] bf16
    e_proj = jnp.dot(enc.reshape(S * TB, E2), w_e_ref[...],
                     preferred_element_type=jnp.float32)          # [S*TB, D] f32

    # hidden-side projection + bias is S-independent: precomputed, broadcast over S.
    energy = jnp.tanh(e_proj.reshape(S, TB, D)
                      + hb_ref[...][None, :, :])                  # [S, TB, D] f32

    # v-projection (Linear(D, 1, bias=False)) as a lane reduction (XLU).
    score = jnp.sum(energy * v_ref[...][None, :, :], axis=-1)     # [S, TB]

    # Transpose the small score so the stored block is [TB, S] (S on lanes).
    score_t = jnp.transpose(score, (1, 0))                        # [TB, S]

    # Softmax over src_len (local to the block: S is un-tiled).
    m = jnp.max(score_t, axis=-1, keepdims=True)
    e = jnp.exp(score_t - m)
    denom = jnp.sum(e, axis=-1, keepdims=True)
    out_ref[...] = e * pl.reciprocal(denom, approx=True)


def _choose_batch_block(S, B, E2, D, vmem_budget_bytes=24 << 20):
    """Largest batch tile (multiple of 8, or full B) that fits the VMEM budget."""
    # Per batch row, double-buffered: enc tile (bf16) + hb row (f32) + out row (f32).
    per_row = 2 * (S * E2 * 2 + D * 4 + S * 4)
    fixed = E2 * D * 2 + D * 4                      # broadcast weight + v
    tb = max(8, ((vmem_budget_bytes - fixed) // max(per_row, 1)) // 8 * 8)
    if B <= 8 or tb >= B:
        return B                                    # single full-batch block
    return tb                                       # multiple of 8 (layout-legal)


def attention_forward(hidden, encoder_outputs, w_attn, b_attn, v_w,
                      *, batch_block=None):
    """hidden: [B, Ddec], encoder_outputs: [S, B, 2*Denc] (PyTorch convention)."""
    S, B, E2 = encoder_outputs.shape
    D = hidden.shape[1]

    # Split the concat-Linear weight: cat order is (hidden, encoder_outputs), so
    # the first D input columns act on hidden, the remaining E2 on the encoder.
    w_h_t = jnp.transpose(w_attn[:, :D])                          # [D, D]
    w_e = jnp.transpose(w_attn[:, D:]).astype(jnp.bfloat16)       # [E2, D] bf16
    v = v_w.reshape(1, D).astype(jnp.float32)                     # [1, D]

    # S-independent hidden projection + bias, computed once in f32 (tiny).
    hb = (jnp.dot(hidden, w_h_t) + b_attn[None, :]).astype(jnp.float32)   # [B, D]

    # Dominant operand: bf16, native [S, B, E2] layout (no transpose).
    enc = encoder_outputs.astype(jnp.bfloat16)

    TB = batch_block if batch_block is not None else _choose_batch_block(S, B, E2, D)
    grid = (pl.cdiv(B, TB),)

    return pl.pallas_call(
        attention_kernel,
        out_shape=jax.ShapeDtypeStruct((B, S), jnp.float32),
        grid=grid,
        in_specs=[
            pl.BlockSpec((S, TB, E2), lambda i: (0, i, 0)),   # enc tile (batch axis)
            pl.BlockSpec((TB, D), lambda i: (i, 0)),          # per-row hidden proj+bias
            pl.BlockSpec((E2, D), lambda i: (0, 0)),          # broadcast enc weight
            pl.BlockSpec((1, D), lambda i: (0, 0)),           # broadcast v
        ],
        out_specs=pl.BlockSpec((TB, S), lambda i: (i, 0)),
        compiler_params=pltpu.CompilerParams(
            dimension_semantics=("parallel",),                # shard over v7x's 2 TCs
            vmem_limit_bytes=32 * 1024 * 1024,
        ),
    )(enc, hb, w_e, v)


if __name__ == "__main__":
    enc_hid_dim = 16
    dec_hid_dim = 32
    batch = 2
    src_len = 8

    key = jax.random.PRNGKey(0)
    k1, k2, k3, k4, k5 = jax.random.split(key, 5)

    # Deterministic synthetic parameters (shapes from the nn.Linear definitions).
    w_attn = jax.random.normal(
        k1, (dec_hid_dim, enc_hid_dim * 2 + dec_hid_dim), jnp.float32) * 0.1
    b_attn = jax.random.normal(k2, (dec_hid_dim,), jnp.float32) * 0.1
    v_w = jax.random.normal(k3, (1, dec_hid_dim), jnp.float32) * 0.1

    hidden = jax.random.normal(k4, (batch, dec_hid_dim), jnp.float32)
    encoder_outputs = jax.random.normal(
        k5, (src_len, batch, enc_hid_dim * 2), jnp.float32)

    out = attention_forward(hidden, encoder_outputs, w_attn, b_attn, v_w)
    out = jax.block_until_ready(out)

    # Pure-JAX f32 reference mirroring the PyTorch forward.
    hid_rep = jnp.repeat(hidden[:, None, :], src_len, axis=1)          # [B,S,Ddec]
    enc_perm = jnp.transpose(encoder_outputs, (1, 0, 2))               # [B,S,2Denc]
    cat = jnp.concatenate([hid_rep, enc_perm], axis=2)
    energy = jnp.tanh(jnp.einsum('bsf,df->bsd', cat, w_attn) + b_attn)
    score = jnp.einsum('bsd,d->bs', energy, v_w[0])
    ref = jax.nn.softmax(score, axis=1)

    assert out.shape == (batch, src_len)
    # bf16 enc/weight + approx reciprocal -> compare with mixed-precision tolerance.
    assert jnp.allclose(jnp.sum(out, axis=1), 1.0, atol=1e-2), jnp.sum(out, axis=1)
    assert jnp.allclose(out, ref, atol=2e-2, rtol=2e-2), (out, ref)
    print("KERNEL_OK")
</pallas_src>

<mosaic_0001>
module attributes {stable_mosaic.version = 11 : i64} {
  func.func @attention_kernel(%arg0: i32, %arg1: memref<8x2x32xbf16, #tpu.memory_space<vmem>>, %arg2: memref<2x32xf32, #tpu.memory_space<vmem>>, %arg3: memref<32x32xbf16, #tpu.memory_space<vmem>>, %arg4: memref<1x32xf32, #tpu.memory_space<vmem>>, %arg5: memref<2x8xf32, #tpu.memory_space<vmem>>) attributes {dimension_semantics = [#tpu.dimension_semantics<parallel>], iteration_bounds = array<i64: 1>, scalar_prefetch = 0 : i64, scratch_operands = 0 : i64, tpu.core_type = #tpu.core_type<tc>, window_params = [{transform_indices = @transform_0, window_bounds = array<i64: 8, 2, 32>}, {transform_indices = @transform_1, window_bounds = array<i64: 2, 32>}, {pipeline_mode = #tpu.pipeline_mode<synchronous>, transform_indices = @transform_2, window_bounds = array<i64: 32, 32>}, {pipeline_mode = #tpu.pipeline_mode<synchronous>, transform_indices = @transform_3, window_bounds = array<i64: 1, 32>}, {transform_indices = @transform_4, window_bounds = array<i64: 2, 8>}]} {
    %c0 = arith.constant 0 : index
    %c0_0 = arith.constant 0 : index
    %c0_1 = arith.constant 0 : index
    %0 = vector.load %arg1[%c0, %c0_0, %c0_1] : memref<8x2x32xbf16, #tpu.memory_space<vmem>>, vector<8x2x32xbf16>
    %1 = vector.shape_cast %0 : vector<8x2x32xbf16> to vector<16x32xbf16>
    %c0_2 = arith.constant 0 : index
    %c0_3 = arith.constant 0 : index
    %2 = vector.load %arg3[%c0_2, %c0_3] : memref<32x32xbf16, #tpu.memory_space<vmem>>, vector<32x32xbf16>
    %cst = arith.constant dense<0.000000e+00> : vector<16x32xf32>
    %3 = tpu.matmul %1, %2, %cst {dimension_numbers = #tpu.dot_dimension_numbers<[1], [0], [0], [1], [0, 0, 1, 1], [], []>} : vector<16x32xbf16>, vector<32x32xbf16>, vector<16x32xf32> -> vector<16x32xf32>
    %4 = vector.shape_cast %3 : vector<16x32xf32> to vector<8x2x32xf32>
    %c0_4 = arith.constant 0 : index
    %c0_5 = arith.constant 0 : index
    %5 = vector.load %arg2[%c0_4, %c0_5] : memref<2x32xf32, #tpu.memory_space<vmem>>, vector<2x32xf32>
    %6 = vector.shape_cast %5 : vector<2x32xf32> to vector<1x2x32xf32>
    %7 = vector.broadcast %6 : vector<1x2x32xf32> to vector<8x2x32xf32>
    %8 = arith.addf %4, %7 : vector<8x2x32xf32>
    %9 = math.tanh %8 : vector<8x2x32xf32>
    %c0_6 = arith.constant 0 : index
    %c0_7 = arith.constant 0 : index
    %10 = vector.load %arg4[%c0_6, %c0_7] : memref<1x32xf32, #tpu.memory_space<vmem>>, vector<1x32xf32>
    %11 = vector.shape_cast %10 : vector<1x32xf32> to vector<1x1x32xf32>
    %12 = vector.broadcast %11 : vector<1x1x32xf32> to vector<8x2x32xf32>
    %13 = arith.mulf %9, %12 : vector<8x2x32xf32>
    %cst_8 = arith.constant dense<0.000000e+00> : vector<8x2xf32>
    %14 = vector.multi_reduction <add>, %13, %cst_8 [2] : vector<8x2x32xf32> to vector<8x2xf32>
    %15 = tpu.transpose %14, [1, 0] : vector<8x2xf32> -> vector<2x8xf32>
    %cst_9 = arith.constant dense<0xFF800000> : vector<2xf32>
    %16 = vector.multi_reduction <maximumf>, %15, %cst_9 [1] : vector<2x8xf32> to vector<2xf32>
    %17 = vector.shape_cast %16 : vector<2xf32> to vector<2x1xf32>
    %18 = vector.broadcast %17 : vector<2x1xf32> to vector<2x8xf32>
    %19 = arith.subf %15, %18 : vector<2x8xf32>
    %20 = math.exp %19 : vector<2x8xf32>
    %cst_10 = arith.constant dense<0.000000e+00> : vector<2xf32>
    %21 = vector.multi_reduction <add>, %20, %cst_10 [1] : vector<2x8xf32> to vector<2xf32>
    %22 = vector.shape_cast %21 : vector<2xf32> to vector<2x1xf32>
    %23 = tpu.reciprocal %22 {approx = true} : vector<2x1xf32> -> vector<2x1xf32>
    %24 = vector.broadcast %23 : vector<2x1xf32> to vector<2x8xf32>
    %25 = arith.mulf %20, %24 : vector<2x8xf32>
    %c0_11 = arith.constant 0 : index
    %c0_12 = arith.constant 0 : index
    %26 = vector.load %arg5[%c0_11, %c0_12] : memref<2x8xf32, #tpu.memory_space<vmem>>, vector<2x8xf32>
    tpu.vector_store %arg5[%c0_11, %c0_12], %25 {strides = array<i32>} : memref<2x8xf32, #tpu.memory_space<vmem>>, vector<2x8xf32>,
    return
  }
  func.func @transform_0(%arg0: i32) -> (i32, i32, i32) {
    %c0_i32 = arith.constant 0 : i32
    %c0_i32_0 = arith.constant 0 : i32
    %c0_i32_1 = arith.constant 0 : i32
    return %c0_i32, %arg0, %c0_i32_0 : i32, i32, i32
  }
  func.func @transform_1(%arg0: i32) -> (i32, i32) {
    %c0_i32 = arith.constant 0 : i32
    %c0_i32_0 = arith.constant 0 : i32
    return %arg0, %c0_i32 : i32, i32
  }
  func.func @transform_2(%arg0: i32) -> (i32, i32) {
    %c0_i32 = arith.constant 0 : i32
    %c0_i32_0 = arith.constant 0 : i32
    %c0_i32_1 = arith.constant 0 : i32
    return %c0_i32, %c0_i32_0 : i32, i32
  }
  func.func @transform_3(%arg0: i32) -> (i32, i32) {
    %c0_i32 = arith.constant 0 : i32
    %c0_i32_0 = arith.constant 0 : i32
    %c0_i32_1 = arith.constant 0 : i32
    return %c0_i32, %c0_i32_0 : i32, i32
  }
  func.func @transform_4(%arg0: i32) -> (i32, i32) {
    %c0_i32 = arith.constant 0 : i32
    %c0_i32_0 = arith.constant 0 : i32
    return %arg0, %c0_i32 : i32, i32
  }
}

</mosaic_0001>

<llo_original>
// kernel: tpu_custom_call.1
$region0: #{tpu_custom_call.1}
  #allocation0 [shape = 'u32[]', space=smem, size = 0x4, offset = 0x4, fixed_abs, tag = 'smem constant byte address 0x4 - core index']
  #allocation1 [shape = 'u32[144,128]{1,0:T(1,128)}', space=vmem, size = 0x12000, scoped, tag = 'internal scratch']
  %s0 = inlined_call_operand.hbm [shape: bf16[8,2,32], index: 0, kind: input, shape index: {}]
  %s1 = inlined_call_operand.vmem [shape: f32[2,32], index: 1, kind: input, shape index: {}]
  %s2 = inlined_call_operand.hbm [shape: bf16[32,32], index: 2, kind: input, shape index: {}]
  %s3 = inlined_call_operand.vmem [shape: f32[1,32], index: 3, kind: input, shape index: {}]
  %s4 = inlined_call_operand.hbm [shape: f32[2,8], index: 4, kind: output, shape index: {}]
  %s5 = sld [smem:[#allocation0]]
  $region34: #{tpu_custom_call.1} parent=0
    _
  %s7 = ssub.s32 1, %s5
  %s8 = scalar_select 0, %s7, %s5
  $region1: #{tpu_custom_call.1} parent=0
    #allocation2 [shape = 'u8[4096]{0}', space=vmem, size = 0x1000, scoped, tag = 'input window, operand 0, single buffered']
    #allocation3 [shape = 's32[1]{0}', space=sflag, size = 0x4, scoped, tag = 'scoped memory for tpu_custom_call.1']
    #allocation4 [shape = 's32[1]{0}', space=sflag, size = 0x4, scoped, tag = 'scoped memory for tpu_custom_call.1']
    #allocation5 [shape = 'u8[8192]{0}', space=vmem, size = 0x2000, scoped, tag = 'input window, operand 2, single buffered']
    #allocation6 [shape = 's32[1]{0}', space=sflag, size = 0x4, scoped, tag = 'scoped memory for tpu_custom_call.1']
    #allocation7 [shape = 'u8[1024]{0}', space=vmem, size = 0x400, scoped, tag = 'output window, operand 0, single buffered']
    %9 = vsyncpa [#allocation3], 0
    %10 = vsyncpa [#allocation6], 0
    %11 = vsyncpa [#allocation4], 0
    // Predicated region
    $region2: #{tpu_custom_call.1} parent=1 // pred_check
      _
    $region3: #{tpu_custom_call.1} parent=1 // pred_check_branch
      %13 = sbr.rel (0) target = $region5
    $region4: #{tpu_custom_call.1} parent=1 // pred_region
      %s15 = ssub.s32 128, 128
      %16 = vsyncadd [#allocation3], %s15
      %s17 = sshll.u32 [#allocation2], 4
      %s18 = int_to_ptr.vmem [resolvable:$true] %s17
      %23 = dma.hbm_to_vmem [thread:$0]  %s0, 128, %s18, [#allocation3], 16, 16, 1
    $region5: #{tpu_custom_call.1} parent=1 // pred_fallthru
      _
    // Predicated region
    $region6: #{tpu_custom_call.1} parent=1 // pred_check
      _
    $region7: #{tpu_custom_call.1} parent=1 // pred_check_branch
      %25 = sbr.rel (0) target = $region9
    $region8: #{tpu_custom_call.1} parent=1 // pred_region
      _
    $region9: #{tpu_custom_call.1} parent=1 // pred_fallthru
      _
    // Predicated region
    $region10: #{tpu_custom_call.1} parent=1 // pred_check
      _
    $region11: #{tpu_custom_call.1} parent=1 // pred_check_branch
      %27 = sbr.rel (0) target = $region13
    $region12: #{tpu_custom_call.1} parent=1 // pred_region
      %s29 = ssub.s32 256, 256
      %30 = vsyncadd [#allocation6], %s29
      %s31 = sshll.u32 [#allocation5], 4
      %s32 = int_to_ptr.vmem [resolvable:$true] %s31
      %37 = dma.hbm_to_vmem [thread:$0]  %s2, 256, %s32, [#allocation6], 64, 64, 4
    $region13: #{tpu_custom_call.1} parent=1 // pred_fallthru
      _
    // Predicated region
    $region14: #{tpu_custom_call.1} parent=1 // pred_check
      _
    $region15: #{tpu_custom_call.1} parent=1 // pred_check_branch
      %39 = sbr.rel (0) target = $region17
    $region16: #{tpu_custom_call.1} parent=1 // pred_region
      _
    $region17: #{tpu_custom_call.1} parent=1 // pred_fallthru
      _
    // Predicated region
    $region18: #{tpu_custom_call.1} parent=1 // pred_check
      _
    $region19: #{tpu_custom_call.1} parent=1 // pred_check_branch
      %41 = sbr.rel (0) target = $region21
    $region20: #{tpu_custom_call.1} parent=1 // pred_region
      %42 = dma.done [#allocation3], 128
    $region21: #{tpu_custom_call.1} parent=1 // pred_fallthru
      _
    // Predicated region
    $region22: #{tpu_custom_call.1} parent=1 // pred_check
      _
    $region23: #{tpu_custom_call.1} parent=1 // pred_check_branch
      %44 = sbr.rel (0) target = $region25
    $region24: #{tpu_custom_call.1} parent=1 // pred_region
      %45 = dma.done [#allocation6], 256
    $region25: #{tpu_custom_call.1} parent=1 // pred_fallthru
      _
    %v47 = vld [vmem:[#allocation2] sm:$0x1]
    %v48 = vld [vmem:[#allocation2 + $0x1] sm:$0x1]
    %v49 = vld [vmem:[#allocation2 + $0x2] sm:$0x1]
    %v50 = vld [vmem:[#allocation2 + $0x3] sm:$0x1]
    %v51 = vld [vmem:[#allocation2 + $0x4] sm:$0x1]
    %v52 = vld [vmem:[#allocation2 + $0x5] sm:$0x1]
    %v53 = vld [vmem:[#allocation2 + $0x6] sm:$0x1]
    %v54 = vld [vmem:[#allocation2 + $0x7] sm:$0x1]
    %v55 = vld [vmem:[#allocation5] sm:$0xf]
    %v56 = vld [vmem:[#allocation5 + $0x4] sm:$0xf]
    %v57 = vld [vmem:[#allocation5 + $0x8] sm:$0xf]
    %v58 = vld [vmem:[#allocation5 + $0xc] sm:$0xf]
    %v67 = vcombine.low %v47, %v48
    %v68 = vcombine.low %v49, %v50
    %v69 = vcombine.low %v51, %v52
    %v70 = vcombine.low %v53, %v54
    %v72 = vunpack.c.l.s4 1966171168
    %v73 = vunpack.c.0.s8 %v72
    %v74 = vlaneseq
    %v75 = vshrl.u32 %v74, 7
    %v76 = vsub.s32 %v73, %v75
    %v77 = vrot.slane %v67, %v76
    %v79 = vunpack.c.l.s4 1966171168
    %v80 = vunpack.c.0.s8 %v79
    %v81 = vlaneseq
    %v82 = vshrl.u32 %v81, 7
    %v83 = vsub.s32 %v80, %v82
    %v84 = vrot.slane %v68, %v83
    %v86 = vunpack.c.l.s4 1966171168
    %v87 = vunpack.c.0.s8 %v86
    %v88 = vlaneseq
    %v89 = vshrl.u32 %v88, 7
    %v90 = vsub.s32 %v87, %v89
    %v91 = vrot.slane %v69, %v90
    %v93 = vunpack.c.l.s4 1966171168
    %v94 = vunpack.c.0.s8 %v93
    %v95 = vlaneseq
    %v96 = vshrl.u32 %v95, 7
    %v97 = vsub.s32 %v94, %v96
    %v98 = vrot.slane %v70, %v97
    %v99 = vcombine.low %v77, %v84
    %v100 = vcombine.low %v91, %v98
    %v102 = vunpack.c.l.s4 1966171168
    %v103 = vunpack.c.0.s8 %v102
    %v104 = vlaneseq
    %v105 = vshrl.u32 %v104, 7
    %v106 = vsub.s32 %v103, %v105
    %v107 = vrot.slane %v99, %v106
    %v109 = vunpack.c.l.s4 1966171168
    %v110 = vunpack.c.0.s8 %v109
    %v111 = vlaneseq
    %v112 = vshrl.u32 %v111, 7
    %v113 = vsub.s32 %v110, %v112
    %v114 = vrot.slane %v100, %v113
    %v115 = vcombine.low %v107, %v114
    %v120 = vunpack.c.l.b16 %v55
    %v121 = vunpack.c.l.b16 %v56
    %v122 = vunpack.c.l.b16 %v57
    %v123 = vunpack.c.l.b16 %v58
    %v124 = vpack.c.b16 %v121, %v120
    %v125 = vpack.c.b16 %v123, %v122
    %vm128 = vcmask 261120
    %v130 = vsel %vm128, %v115, 0
    %132 = vmatprep.subr.bf16.mxu0 0
    %133 = vmatpush1.bf16.msra.mxu0 %v124
    %134 = vmatprep.subr.bf16.mxu0 0
    %135 = vmatpush1.bf16.msra.mxu0 %v125
    %136 = vmatprep.subr.bf16.mxu0 0
    %137 = vmatpush1.bf16.msra.mxu0 0
    %138 = vmatprep.subr.bf16.mxu0 0
    %139 = vmatpush1.bf16.msra.mxu0 0
    %140 = vmatprep.subr.bf16.mxu0 0
    %141 = vmatpush1.bf16.msra.mxu0 0
    %142 = vmatprep.subr.bf16.mxu0 0
    %143 = vmatpush1.bf16.msra.mxu0 0
    %144 = vmatprep.subr.bf16.mxu0 0
    %145 = vmatpush1.bf16.msra.mxu0 0
    %146 = vmatprep.subr.bf16.mxu0 0
    %147 = vmatpush1.bf16.msra.mxu0 0
    %148 = vmatprep.subr.bf16.mxu0 0
    %149 = vmatpush1.bf16.msra.mxu0 0
    %150 = vmatprep.subr.bf16.mxu0 0
    %151 = vmatpush1.bf16.msra.mxu0 0
    %152 = vmatprep.subr.bf16.mxu0 0
    %153 = vmatpush1.bf16.msra.mxu0 0
    %154 = vmatprep.subr.bf16.mxu0 0
    %155 = vmatpush1.bf16.msra.mxu0 0
    %156 = vmatprep.subr.bf16.mxu0 0
    %157 = vmatpush1.bf16.msra.mxu0 0
    %158 = vmatprep.subr.bf16.mxu0 0
    %159 = vmatpush1.bf16.msra.mxu0 0
    %160 = vmatprep.subr.bf16.mxu0 0
    %161 = vmatpush1.bf16.msra.mxu0 0
    %162 = vmatprep.subr.bf16.mxu0 0
    %163 = vmatpush1.bf16.msra.mxu0 0
    %164 = vmatprep.mubr.bf16.mxu0 0
    %165 = vmatmul.mubr.bf16.gmra.mrb[0].mxu0 %v130
    %v166 = vpop.f32.mrb[0].mxu0
    %v167 = vadd.f32 0.0, %v166
    %v168 = vpop.f32.mrb[0].mxu0
    %v169 = vpop.f32.mrb[0].mxu0
    %v170 = vadd.f32 0.0, %v169
    %v171 = vpop.f32.mrb[0].mxu0
    %172 = vdwg.mxu0
    %v175 = vcombine.high %v167, %v167
    %v177 = vunpack.c.l.s4 1983009808
    %v178 = vunpack.c.0.s8 %v177
    %v179 = vlaneseq
    %v180 = vshrl.u32 %v179, 7
    %v181 = vsub.s32 %v178, %v180
    %v182 = vrot.slane %v167, %v181
    %v184 = vunpack.c.l.s4 1983009808
    %v185 = vunpack.c.0.s8 %v184
    %v186 = vlaneseq
    %v187 = vshrl.u32 %v186, 7
    %v188 = vsub.s32 %v185, %v187
    %v189 = vrot.slane %v175, %v188
    %v190 = vcombine.high %v182, %v182
    %v191 = vcombine.high %v189, %v189
    %v192 = vcombine.high %v170, %v170
    %v194 = vunpack.c.l.s4 1983009808
    %v195 = vunpack.c.0.s8 %v194
    %v196 = vlaneseq
    %v197 = vshrl.u32 %v196, 7
    %v198 = vsub.s32 %v195, %v197
    %v199 = vrot.slane %v170, %v198
    %v201 = vunpack.c.l.s4 1983009808
    %v202 = vunpack.c.0.s8 %v201
    %v203 = vlaneseq
    %v204 = vshrl.u32 %v203, 7
    %v205 = vsub.s32 %v202, %v204
    %v206 = vrot.slane %v192, %v205
    %v207 = vcombine.high %v199, %v199
    %v208 = vcombine.high %v206, %v206
    %v217 = vld [vmem:[%s1] sm:$0x3]
    %v218 = vadd.f32 %v182, %v217
    %v219 = vadd.f32 %v190, %v217
    %v220 = vadd.f32 %v189, %v217
    %v221 = vadd.f32 %v191, %v217
    %v222 = vadd.f32 %v199, %v217
    %v223 = vadd.f32 %v207, %v217
    %v224 = vadd.f32 %v206, %v217
    %v225 = vadd.f32 %v208, %v217
    %v226 = vtanh.pop %v218
    %v227 = vtanh.pop %v219
    %v228 = vtanh.pop %v220
    %v229 = vtanh.pop %v221
    %v230 = vtanh.pop %v222
    %v231 = vtanh.pop %v223
    %v232 = vtanh.pop %v224
    %v233 = vtanh.pop %v225
    %v234 = vld [vmem:[%s3] sm:$0x1]
    %v236 = vlaneseq
    %v237 = vshrl.u32 %v236, 7
    %v238 = vsub.s32 0, %v237
    %v239 = vrot.slane %v234, %v238
    %v241 = vmul.f32 %v226, %v239
    %v242 = vmul.f32 %v227, %v239
    %v243 = vmul.f32 %v228, %v239
    %v244 = vmul.f32 %v229, %v239
    %v245 = vmul.f32 %v230, %v239
    %v246 = vmul.f32 %v231, %v239
    %v247 = vmul.f32 %v232, %v239
    %v248 = vmul.f32 %v233, %v239
    %vm249 = vcmask 254976
    %v250 = vsel %vm249, %v241, 0.0
    %251 = vadd.xlane.f32.xlu0 %v250
    %v252 = vpop.xlane.xlu0 %251
    %v253 = vsel %vm249, %v242, 0.0
    %254 = vadd.xlane.f32.xlu0 %v253
    %v255 = vpop.xlane.xlu0 %254
    %v256 = vsel %vm249, %v243, 0.0
    %257 = vadd.xlane.f32.xlu0 %v256
    %v258 = vpop.xlane.xlu0 %257
    %v259 = vsel %vm249, %v244, 0.0
    %260 = vadd.xlane.f32.xlu0 %v259
    %v261 = vpop.xlane.xlu0 %260
    %v262 = vsel %vm249, %v245, 0.0
    %263 = vadd.xlane.f32.xlu0 %v262
    %v264 = vpop.xlane.xlu0 %263
    %v265 = vsel %vm249, %v246, 0.0
    %266 = vadd.xlane.f32.xlu0 %v265
    %v267 = vpop.xlane.xlu0 %266
    %v268 = vsel %vm249, %v247, 0.0
    %269 = vadd.xlane.f32.xlu0 %v268
    %v270 = vpop.xlane.xlu0 %269
    %v271 = vsel %vm249, %v248, 0.0
    %272 = vadd.xlane.f32.xlu0 %v271
    %v273 = vpop.xlane.xlu0 %272
    %v282 = vlaneseq
    %v283 = vand.u32 %v282, 127
    %v284 = vlaneseq
    %v285 = vshrl.u32 %v284, 7
    %v286 = vsub.s32 %v283, %v285
    %v287 = vrot.slane %v252, %v286
    %v288 = vlaneseq
    %v289 = vshrl.u32 %v288, 7
    %v290 = vsub.s32 %v283, %v289
    %v291 = vrot.slane %v255, %v290
    %v292 = vlaneseq
    %v293 = vshrl.u32 %v292, 7
    %v294 = vsub.s32 %v283, %v293
    %v295 = vrot.slane %v258, %v294
    %v296 = vlaneseq
    %v297 = vshrl.u32 %v296, 7
    %v298 = vsub.s32 %v283, %v297
    %v299 = vrot.slane %v261, %v298
    %v300 = vlaneseq
    %v301 = vshrl.u32 %v300, 7
    %v302 = vsub.s32 %v283, %v301
    %v303 = vrot.slane %v264, %v302
    %v304 = vlaneseq
    %v305 = vshrl.u32 %v304, 7
    %v306 = vsub.s32 %v283, %v305
    %v307 = vrot.slane %v267, %v306
    %v308 = vlaneseq
    %v309 = vshrl.u32 %v308, 7
    %v310 = vsub.s32 %v283, %v309
    %v311 = vrot.slane %v270, %v310
    %v312 = vlaneseq
    %v313 = vshrl.u32 %v312, 7
    %v314 = vsub.s32 %v283, %v313
    %v315 = vrot.slane %v273, %v314
    %vm316 = vcmask 1041409
    %v317 = vsel %vm316, %v291, %v287
    %vm318 = vcmask 1042434
    %v319 = vsel %vm318, %v295, %v317
    %vm320 = vcmask 1043459
    %v321 = vsel %vm320, %v299, %v319
    %vm322 = vcmask 1044484
    %v323 = vsel %vm322, %v303, %v321
    %vm324 = vcmask 1045509
    %v325 = vsel %vm324, %v307, %v323
    %vm326 = vcmask 1046534
    %v327 = vsel %vm326, %v311, %v325
    %vm328 = vcmask 1047559
    %v329 = vsel %vm328, %v315, %v327
    %331 = vxpose.xlu0.b32.start [1/16] %v329, 128
    %332 = vxpose.xlu0.b32.cont [2/16] 0.0, 128
    %333 = vxpose.xlu0.b32.cont [3/16] 0.0, 128
    %334 = vxpose.xlu0.b32.cont [4/16] 0.0, 128
    %335 = vxpose.xlu0.b32.cont [5/16] 0.0, 128
    %336 = vxpose.xlu0.b32.cont [6/16] 0.0, 128
    %337 = vxpose.xlu0.b32.cont [7/16] 0.0, 128
    %338 = vxpose.xlu0.b32.cont [8/16] 0.0, 128
    %339 = vxpose.xlu0.b32.cont [9/16] 0.0, 128
    %340 = vxpose.xlu0.b32.cont [10/16] 0.0, 128
    %341 = vxpose.xlu0.b32.cont [11/16] 0.0, 128
    %342 = vxpose.xlu0.b32.cont [12/16] 0.0, 128
    %343 = vxpose.xlu0.b32.cont [13/16] 0.0, 128
    %344 = vxpose.xlu0.b32.cont [14/16] 0.0, 128
    %345 = vxpose.xlu0.b32.cont [15/16] 0.0, 128
    %346 = vxpose.xlu0.b32.end [16/16] 0.0, 128
    %v347 = vpop.trf.xlu0
    %v348 = vpop.trf.xlu0
    %v349 = vpop.trf.xlu0
    %v350 = vpop.trf.xlu0
    %v351 = vpop.trf.xlu0
    %v352 = vpop.trf.xlu0
    %v353 = vpop.trf.xlu0
    %v354 = vpop.trf.xlu0
    %v355 = vpop.trf.xlu0
    %v356 = vpop.trf.xlu0
    %v357 = vpop.trf.xlu0
    %v358 = vpop.trf.xlu0
    %v359 = vpop.trf.xlu0
    %v360 = vpop.trf.xlu0
    %v361 = vpop.trf.xlu0
    %v362 = vpop.trf.xlu0
    %vm363 = vcmask 58368
    %v364 = vsel %vm363, %v347, -inf
    %365 = vmax.xlane.f32.xlu0 %v364
    %v366 = vpop.xlane.xlu0 %365
    %v367 = vsub.f32 %v347, %v366
    %v368 = vmul.f32 %v367, 1.442695
    %v369 = vpow.pop %v368
    %v370 = vsel %vm363, %v369, 0.0
    %371 = vadd.xlane.f32.xlu0 %v370
    %v372 = vpop.xlane.xlu0 %371
    %v373 = vrcp.pop %v372
    %v374 = vmul.f32 %v369, %v373
    %375 = vst.msk [vmem:[#allocation7] sm:$0x3] %vm363, %v374
    // Predicated region
    $region26: #{tpu_custom_call.1} parent=1 // pred_check
      _
    $region27: #{tpu_custom_call.1} parent=1 // pred_check_branch
      %377 = sbr.rel (0) target = $region29
    $region28: #{tpu_custom_call.1} parent=1 // pred_region
      %s379 = ssub.s32 32, 32
      %380 = vsyncadd [#allocation4], %s379
      %s382 = sshll.u32 [#allocation7], 4
      %s383 = int_to_ptr.vmem [resolvable:$true] %s382
      %385 = dma.vmem_to_hbm [thread:$0]  %s383, 32, %s4, [#allocation4]
    $region29: #{tpu_custom_call.1} parent=1 // pred_fallthru
      _
    // Predicated region
    $region30: #{tpu_custom_call.1} parent=1 // pred_check
      _
    $region31: #{tpu_custom_call.1} parent=1 // pred_check_branch
      %387 = sbr.rel (0) target = $region33
    $region32: #{tpu_custom_call.1} parent=1 // pred_region
      %388 = dma.done [#allocation4], 32
    $region33: #{tpu_custom_call.1} parent=1 // pred_fallthru
      _
    %389 = vsyncpa [#allocation3], 1
    %390 = vsyncpa [#allocation6], 1
    %391 = vsyncpa [#allocation4], 1

</llo_original>
